<compile_context>
chip_gen: v7x
topology: tpu7x:2x2x1
jax: 0.10.0
libtpu: 0.0.40
codegen_flags: <defaults>
</compile_context>

<pallas_src>
import functools
import math

import numpy as np
import jax
import jax.numpy as jnp
from jax.experimental import pallas as pl
from jax.experimental.pallas import tpu as pltpu

KH = KW = 5
C_OUT = 6
C_PAD = 8           # pad channels 6 -> 8: full sublane group, unmasked stores
N_PHASES = 4        # the 4 pool phases (di, dj) of the 2x2 max-pool
N_COLS = 36         # distinct (alpha, beta, p, q) shifted-operand rows
LANE = 128


def _shift_lanes(x, d):
    """out[..., i] = x[..., i + d] (wrap-around values only ever land in lanes
    that are sliced off as padding on the host)."""
    if d == 0:
        return x
    return jnp.concatenate([x[:, d:], x[:, :d]], axis=1)


def conv_relu_pool_kernel(x_ref, w_ref, b_ref, o_ref, *, wp):
    # x_ref: (1, 4, T) bf16  -- 4 stride-2 phase planes of a batch tile,
    #                           flattened (image, row, col) on the lane axis.
    # w_ref: (32, 36)  bf16  -- rows = pool-phase*8 + channel.
    # b_ref: (8, 1)    f32
    # o_ref: (1, 8, T) f32
    xp = x_ref[0]                                          # (4, T)
    # In-kernel im2col: 9 static lane shifts (alpha*WP + beta) of the 4 phase
    # planes give the 36 operand rows; valid output lanes never read wrapped
    # or out-of-image data.
    blocks = []
    for alpha in range(3):
        for beta in range(3):
            blocks.append(_shift_lanes(xp, alpha * wp + beta))
    a_all = jnp.concatenate(blocks, axis=0)                # (36, T)
    # One MXU push: conv for all channels and all 4 pool phases.
    s = jnp.dot(w_ref[...], a_all, preferred_element_type=jnp.float32)  # (32, T)
    # 2x2 max-pool = max over the four 8-row (sublane-aligned) phase blocks.
    pooled = jnp.maximum(jnp.maximum(s[0:C_PAD], s[C_PAD:2 * C_PAD]),
                         jnp.maximum(s[2 * C_PAD:3 * C_PAD], s[3 * C_PAD:]))
    # Bias + ReLU once, after the pool max.
    o_ref[0] = jnp.maximum(pooled + b_ref[...], 0.0)


def _pack_weights(weight):
    """(6,1,5,5) conv weights -> (32, 36): row = pool-phase*8 + channel,
    col = (alpha*3+beta)*4 + p*2 + q holds w[c, 2*alpha+p-di, 2*beta+q-dj]."""
    idx = np.zeros((N_PHASES * C_PAD, N_COLS), np.int32)
    msk = np.zeros((N_PHASES * C_PAD, N_COLS), np.float32)
    for di in range(2):
        for dj in range(2):
            row0 = (di * 2 + dj) * C_PAD
            for alpha in range(3):
                for beta in range(3):
                    for p in range(2):
                        for q in range(2):
                            ki = 2 * alpha + p - di
                            kj = 2 * beta + q - dj
                            if 0 <= ki < KH and 0 <= kj < KW:
                                col = (alpha * 3 + beta) * 4 + p * 2 + q
                                for c in range(C_OUT):
                                    idx[row0 + c, col] = (c * KH + ki) * KW + kj
                                    msk[row0 + c, col] = 1.0
    w_flat = weight.astype(jnp.float32).reshape(-1)
    return (w_flat[jnp.asarray(idx)] * jnp.asarray(msk)).astype(jnp.bfloat16)


def simple_conv_forward(x, weight, bias, *, lane_target=2048):
    """x: (N, 1, H, W) f32; weight: (6, 1, 5, 5); bias: (6,).
    Returns (N, 6, (H-4)//2, (W-4)//2) == MaxPool2d(2,2)(relu(Conv2d(1,6,5)(x)))."""
    N, C, H, W = x.shape
    assert C == 1, "SimpleConv expects a single input channel"
    assert H >= KH + 1 and W >= KW + 1, "need at least one pooled output"
    HO, WO = H - KH + 1, W - KW + 1
    PH, PW = HO // 2, WO // 2            # MaxPool2d(2,2) floor-truncates odd dims
    HP, WP = (H + 1) // 2, (W + 1) // 2  # phase-plane dims (input padded to even)
    S = HP * WP                          # lanes contributed by one image

    # Batch-tile size: largest divisor of N with NB*S <= lane_target lanes,
    # preferring lane-dense (multiple-of-128) blocks for unmasked stores.
    # TODO(synk): for very large single images (S >> lane_target) tile the
    # spatial axis inside the image with halos instead of whole-image tiles.
    divs = [d for d in range(1, N + 1) if N % d == 0 and d * S <= lane_target] or [1]
    dense = [d for d in divs if (d * S) % LANE == 0]
    NB = max(dense) if dense else max(divs)
    n_tiles = N // NB
    T = NB * S

    # --- host glue (~1x the input bytes): stride-2 phase split + flatten ---
    x2 = jnp.pad(x[:, 0], ((0, 0), (0, 2 * HP - H), (0, 2 * WP - W)))
    xp = x2.reshape(N, HP, 2, WP, 2).transpose(2, 4, 0, 1, 3)       # (p,q,N,HP,WP)
    xp = xp.reshape(4, N, S).transpose(1, 0, 2)                     # (N,4,S)
    xp = (xp.reshape(n_tiles, NB, 4, S).transpose(0, 2, 1, 3)
            .reshape(n_tiles, 4, T).astype(jnp.bfloat16))

    w_all = _pack_weights(weight)                                    # (32,36) bf16
    b_all = jnp.zeros((C_PAD, 1), jnp.float32).at[:C_OUT, 0].set(bias)

    pooled = pl.pallas_call(
        functools.partial(conv_relu_pool_kernel, wp=WP),
        out_shape=jax.ShapeDtypeStruct((n_tiles, C_PAD, T), jnp.float32),
        grid_spec=pltpu.PrefetchScalarGridSpec(
            num_scalar_prefetch=0,
            grid=(n_tiles,),                       # batch tiles; pipelined DMA
            in_specs=[
                pl.BlockSpec((1, 4, T), lambda i: (i, 0, 0)),
                pl.BlockSpec((N_PHASES * C_PAD, N_COLS), lambda i: (0, 0)),
                pl.BlockSpec((C_PAD, 1), lambda i: (0, 0)),
            ],
            out_specs=pl.BlockSpec((1, C_PAD, T), lambda i: (i, 0, 0)),
        ),
        compiler_params=pltpu.CompilerParams(
            dimension_semantics=("parallel",)),    # v7x: shard tiles across both TCs
    )(xp, w_all, b_all)

    # --- host glue: strip channel/spatial padding, back to NCHW (tiny output) ---
    out = pooled.reshape(n_tiles, C_PAD, NB, HP, WP).transpose(0, 2, 1, 3, 4)
    out = out.reshape(N, C_PAD, HP, WP)
    return out[:, :C_OUT, :PH, :PW]


def reference_forward(x, weight, bias):
    conv = jax.lax.conv_general_dilated(
        x, weight, window_strides=(1, 1), padding="VALID",
        dimension_numbers=("NCHW", "OIHW", "NCHW")) + bias.reshape(1, -1, 1, 1)
    relu = jnp.maximum(conv, 0.0)
    return jax.lax.reduce_window(relu, -jnp.inf, jax.lax.max,
                                 (1, 1, 2, 2), (1, 1, 2, 2), "VALID")


if __name__ == "__main__":
    key = jax.random.PRNGKey(0)
    kx, kw, kb = jax.random.split(key, 3)

    # Input consistent with nn.Conv2d(1, 6, 5): batch=4, channels=1, spatial 16x16.
    x = jax.random.normal(kx, (4, 1, 16, 16), dtype=jnp.float32)

    # PyTorch-style init: U(-1/sqrt(fan_in), 1/sqrt(fan_in)), fan_in = 1*5*5.
    bound = 1.0 / math.sqrt(KH * KW)
    weight = jax.random.uniform(kw, (C_OUT, 1, KH, KW), jnp.float32, -bound, bound)
    bias = jax.random.uniform(kb, (C_OUT,), jnp.float32, -bound, bound)

    # lane_target=128 forces a 2-step grid at this toy size so the pipelined,
    # multi-tile path is exercised; keep the default (2048) for real batches.
    out = jax.block_until_ready(
        simple_conv_forward(x, weight, bias, lane_target=128))
    ref = reference_forward(x, weight, bias)

    assert out.shape == (4, C_OUT, 6, 6), out.shape
    # bf16 operands (per the perf review) -> relaxed tolerance vs the f32 reference.
    err = float(jnp.max(jnp.abs(out - ref)))
    assert jnp.allclose(out, ref, atol=5e-2, rtol=5e-2), err
    print("KERNEL_OK")
</pallas_src>

<mosaic_0001>
module attributes {stable_mosaic.version = 11 : i64} {
  func.func @conv_relu_pool_kernel(%arg0: i32, %arg1: memref<1x4x128xbf16, #tpu.memory_space<vmem>>, %arg2: memref<32x36xbf16, #tpu.memory_space<vmem>>, %arg3: memref<8x1xf32, #tpu.memory_space<vmem>>, %arg4: memref<1x8x128xf32, #tpu.memory_space<vmem>>) attributes {dimension_semantics = [#tpu.dimension_semantics<parallel>], iteration_bounds = array<i64: 2>, scalar_prefetch = 0 : i64, scratch_operands = 0 : i64, tpu.core_type = #tpu.core_type<tc>, window_params = [{transform_indices = @transform_0, window_bounds = array<i64: 1, 4, 128>}, {pipeline_mode = #tpu.pipeline_mode<synchronous>, transform_indices = @transform_1, window_bounds = array<i64: 32, 36>}, {pipeline_mode = #tpu.pipeline_mode<synchronous>, transform_indices = @transform_2, window_bounds = array<i64: 8, 1>}, {transform_indices = @transform_3, window_bounds = array<i64: 1, 8, 128>}]} {
    %c0 = arith.constant 0 : index
    %c0_0 = arith.constant 0 : index
    %c0_1 = arith.constant 0 : index
    %0 = vector.load %arg1[%c0, %c0_0, %c0_1] : memref<1x4x128xbf16, #tpu.memory_space<vmem>>, vector<1x4x128xbf16>
    %1 = vector.shape_cast %0 : vector<1x4x128xbf16> to vector<4x128xbf16>
    %2 = vector.extract_strided_slice %1 {offsets = [0, 1], sizes = [4, 127], strides = [1, 1]} : vector<4x128xbf16> to vector<4x127xbf16>
    %3 = vector.extract_strided_slice %1 {offsets = [0, 0], sizes = [4, 1], strides = [1, 1]} : vector<4x128xbf16> to vector<4x1xbf16>
    %4 = tpu.concatenate %2, %3 in 1 : vector<4x127xbf16>, vector<4x1xbf16> -> vector<4x128xbf16>
    %5 = vector.extract_strided_slice %1 {offsets = [0, 2], sizes = [4, 126], strides = [1, 1]} : vector<4x128xbf16> to vector<4x126xbf16>
    %6 = vector.extract_strided_slice %1 {offsets = [0, 0], sizes = [4, 2], strides = [1, 1]} : vector<4x128xbf16> to vector<4x2xbf16>
    %7 = tpu.concatenate %5, %6 in 1 : vector<4x126xbf16>, vector<4x2xbf16> -> vector<4x128xbf16>
    %8 = vector.extract_strided_slice %1 {offsets = [0, 8], sizes = [4, 120], strides = [1, 1]} : vector<4x128xbf16> to vector<4x120xbf16>
    %9 = vector.extract_strided_slice %1 {offsets = [0, 0], sizes = [4, 8], strides = [1, 1]} : vector<4x128xbf16> to vector<4x8xbf16>
    %10 = tpu.concatenate %8, %9 in 1 : vector<4x120xbf16>, vector<4x8xbf16> -> vector<4x128xbf16>
    %11 = vector.extract_strided_slice %1 {offsets = [0, 9], sizes = [4, 119], strides = [1, 1]} : vector<4x128xbf16> to vector<4x119xbf16>
    %12 = vector.extract_strided_slice %1 {offsets = [0, 0], sizes = [4, 9], strides = [1, 1]} : vector<4x128xbf16> to vector<4x9xbf16>
    %13 = tpu.concatenate %11, %12 in 1 : vector<4x119xbf16>, vector<4x9xbf16> -> vector<4x128xbf16>
    %14 = vector.extract_strided_slice %1 {offsets = [0, 10], sizes = [4, 118], strides = [1, 1]} : vector<4x128xbf16> to vector<4x118xbf16>
    %15 = vector.extract_strided_slice %1 {offsets = [0, 0], sizes = [4, 10], strides = [1, 1]} : vector<4x128xbf16> to vector<4x10xbf16>
    %16 = tpu.concatenate %14, %15 in 1 : vector<4x118xbf16>, vector<4x10xbf16> -> vector<4x128xbf16>
    %17 = vector.extract_strided_slice %1 {offsets = [0, 16], sizes = [4, 112], strides = [1, 1]} : vector<4x128xbf16> to vector<4x112xbf16>
    %18 = vector.extract_strided_slice %1 {offsets = [0, 0], sizes = [4, 16], strides = [1, 1]} : vector<4x128xbf16> to vector<4x16xbf16>
    %19 = tpu.concatenate %17, %18 in 1 : vector<4x112xbf16>, vector<4x16xbf16> -> vector<4x128xbf16>
    %20 = vector.extract_strided_slice %1 {offsets = [0, 17], sizes = [4, 111], strides = [1, 1]} : vector<4x128xbf16> to vector<4x111xbf16>
    %21 = vector.extract_strided_slice %1 {offsets = [0, 0], sizes = [4, 17], strides = [1, 1]} : vector<4x128xbf16> to vector<4x17xbf16>
    %22 = tpu.concatenate %20, %21 in 1 : vector<4x111xbf16>, vector<4x17xbf16> -> vector<4x128xbf16>
    %23 = vector.extract_strided_slice %1 {offsets = [0, 18], sizes = [4, 110], strides = [1, 1]} : vector<4x128xbf16> to vector<4x110xbf16>
    %24 = vector.extract_strided_slice %1 {offsets = [0, 0], sizes = [4, 18], strides = [1, 1]} : vector<4x128xbf16> to vector<4x18xbf16>
    %25 = tpu.concatenate %23, %24 in 1 : vector<4x110xbf16>, vector<4x18xbf16> -> vector<4x128xbf16>
    %26 = tpu.concatenate %1, %4, %7, %10, %13, %16, %19, %22, %25 in 0 : vector<4x128xbf16>, vector<4x128xbf16>, vector<4x128xbf16>, vector<4x128xbf16>, vector<4x128xbf16>, vector<4x128xbf16>, vector<4x128xbf16>, vector<4x128xbf16>, vector<4x128xbf16> -> vector<36x128xbf16>
    %c0_2 = arith.constant 0 : index
    %c0_3 = arith.constant 0 : index
    %27 = vector.load %arg2[%c0_2, %c0_3] : memref<32x36xbf16, #tpu.memory_space<vmem>>, vector<32x36xbf16>
    %cst = arith.constant dense<0.000000e+00> : vector<32x128xf32>
    %28 = tpu.matmul %27, %26, %cst {dimension_numbers = #tpu.dot_dimension_numbers<[1], [0], [0], [1], [0, 0, 1, 1], [], []>} : vector<32x36xbf16>, vector<36x128xbf16>, vector<32x128xf32> -> vector<32x128xf32>
    %29 = vector.extract_strided_slice %28 {offsets = [0, 0], sizes = [8, 128], strides = [1, 1]} : vector<32x128xf32> to vector<8x128xf32>
    %30 = vector.extract_strided_slice %28 {offsets = [8, 0], sizes = [8, 128], strides = [1, 1]} : vector<32x128xf32> to vector<8x128xf32>
    %31 = arith.maximumf %29, %30 : vector<8x128xf32>
    %32 = vector.extract_strided_slice %28 {offsets = [16, 0], sizes = [8, 128], strides = [1, 1]} : vector<32x128xf32> to vector<8x128xf32>
    %33 = vector.extract_strided_slice %28 {offsets = [24, 0], sizes = [8, 128], strides = [1, 1]} : vector<32x128xf32> to vector<8x128xf32>
    %34 = arith.maximumf %32, %33 : vector<8x128xf32>
    %35 = arith.maximumf %31, %34 : vector<8x128xf32>
    %c0_4 = arith.constant 0 : index
    %c0_5 = arith.constant 0 : index
    %36 = vector.load %arg3[%c0_4, %c0_5] : memref<8x1xf32, #tpu.memory_space<vmem>>, vector<8x1xf32>
    %37 = vector.broadcast %36 : vector<8x1xf32> to vector<8x128xf32>
    %38 = arith.addf %35, %37 : vector<8x128xf32>
    %cst_6 = arith.constant 0.000000e+00 : f32
    %39 = vector.broadcast %cst_6 : f32 to vector<8x128xf32>
    %40 = arith.maximumf %38, %39 : vector<8x128xf32>
    %c0_7 = arith.constant 0 : index
    %c0_8 = arith.constant 0 : index
    %c0_9 = arith.constant 0 : index
    %41 = vector.load %arg4[%c0_7, %c0_8, %c0_9] : memref<1x8x128xf32, #tpu.memory_space<vmem>>, vector<1x8x128xf32>
    %42 = vector.shape_cast %41 : vector<1x8x128xf32> to vector<8x128xf32>
    %43 = vector.shape_cast %40 : vector<8x128xf32> to vector<1x8x128xf32>
    tpu.vector_store %arg4[%c0_7, %c0_8, %c0_9], %43 {strides = array<i32>} : memref<1x8x128xf32, #tpu.memory_space<vmem>>, vector<1x8x128xf32>,
    return
  }
  func.func @transform_0(%arg0: i32) -> (i32, i32, i32) {
    %c0_i32 = arith.constant 0 : i32
    %c0_i32_0 = arith.constant 0 : i32
    %c0_i32_1 = arith.constant 0 : i32
    return %arg0, %c0_i32, %c0_i32_0 : i32, i32, i32
  }
  func.func @transform_1(%arg0: i32) -> (i32, i32) {
    %c0_i32 = arith.constant 0 : i32
    %c0_i32_0 = arith.constant 0 : i32
    %c0_i32_1 = arith.constant 0 : i32
    return %c0_i32, %c0_i32_0 : i32, i32
  }
  func.func @transform_2(%arg0: i32) -> (i32, i32) {
    %c0_i32 = arith.constant 0 : i32
    %c0_i32_0 = arith.constant 0 : i32
    %c0_i32_1 = arith.constant 0 : i32
    return %c0_i32, %c0_i32_0 : i32, i32
  }
  func.func @transform_3(%arg0: i32) -> (i32, i32, i32) {
    %c0_i32 = arith.constant 0 : i32
    %c0_i32_0 = arith.constant 0 : i32
    %c0_i32_1 = arith.constant 0 : i32
    return %arg0, %c0_i32, %c0_i32_0 : i32, i32, i32
  }
}

</mosaic_0001>

<llo_original>
// kernel: tpu_custom_call.1
$region0: #{tpu_custom_call.1}
  #allocation0 [shape = 'u32[]', space=smem, size = 0x4, offset = 0x4, fixed_abs, tag = 'smem constant byte address 0x4 - core index']
  #allocation1 [shape = 'u32[144,128]{1,0:T(1,128)}', space=vmem, size = 0x12000, scoped, tag = 'internal scratch']
  %s0 = inlined_call_operand.vmem [shape: bf16[2,4,128], index: 0, kind: input, shape index: {}]
  %s1 = inlined_call_operand.hbm [shape: bf16[32,36], index: 1, kind: input, shape index: {}]
  %s2 = inlined_call_operand.vmem [shape: f32[8,1], index: 2, kind: input, shape index: {}]
  %s3 = inlined_call_operand.hbm [shape: f32[2,8,128], index: 3, kind: output, shape index: {}]
  %s4 = sld [smem:[#allocation0]]
  $region49: #{tpu_custom_call.1} parent=0
    _
  %s6 = ssub.s32 1, %s4
  %s7 = scalar_select 0, %s6, %s4
  $region1: #{tpu_custom_call.1} parent=0
    #allocation2 [shape = 'u8[8192]{0}', space=vmem, size = 0x2000, scoped, tag = 'input window, operand 1, single buffered']
    #allocation3 [shape = 's32[2]{0}', space=sflag, size = 0x8, scoped, tag = 'scoped memory for tpu_custom_call.1']
    #allocation4 [shape = 's32[2]{0}', space=sflag, size = 0x8, scoped, tag = 'scoped memory for tpu_custom_call.1']
    #allocation5 [shape = 'u8[8192]{0}', space=vmem, size = 0x2000, scoped, tag = 'output window, operand 0']
    %8 = vsyncpa [#allocation3], 0
    %9 = vsyncpa [#allocation4], 0
    %s10 = scalar_lea.sflag [#allocation4], 1
    %11 = vsyncpa %s10, 0
    loop: start=0, step=1, limit=4
    $region2: #{tpu_custom_call.1} parent=1 // loop_pre_header
      _
    $region3: #{tpu_custom_call.1} parent=1 // loop_header
      %s13 = sphi 0, %s17
      %p14 = scmp.ge.s32.totalorder %s13, 4
      %s23 = sphi 0, %s25
      %s26 = sphi 0, %s23
      %s27 = sphi 0, %s26
      %s43 = sphi 0, %s27
      %s47 = sphi 0, %s47
      %s49 = sphi 0, %s47
      %s50 = sphi 0, %s49
      %s64 = sphi 0, %s50
      %s68 = sphi 0, %s68
      %s70 = sphi 0, %s68
      %s71 = sphi 0, %s70
      %s85 = sphi 0, %s71
      %s91 = sphi 0, %s93
      %s94 = sphi 0, %s91
      %s95 = sphi 0, %s94
      %s111 = sphi 0, %s95
    $region4: #{tpu_custom_call.1} parent=1 // loop_header_branch
      %16 = sbr.rel (%p14) target = $region8
    $region5: #{tpu_custom_call.1} parent=1 // loop_body
      %s18 = ssub.s32 %s13, 1
      %s19 = ssub.s32 %s13, 2
      %s20 = sadd.s32 %s13, 1
      %s21 = ssub.s32 %s13, %s20
      %p22 = scmp.eq.s32.totalorder %s21, 0
      %s24 = sadd.s32 %s23, 1
      %s25 = scalar_select %p22, %s23, %s24
      %p28 = pneg %p22
      %p29 = scmp.eq.s32.totalorder %s13, 1
      %p30 = por %p28, %p29
      %p31 = scmp.ne.s32.totalorder %s23, %s26
      %p32 = scmp.eq.s32.totalorder %s13, 0
      %p33 = por %p31, %p32
      %p34 = scmp.ne.s32.totalorder %s23, %s26
      %p35 = scmp.eq.s32.totalorder %s18, 1
      %p36 = por %p34, %p35
      %p37 = scmp.ne.s32.totalorder %s26, %s27
      %p38 = scmp.eq.s32.totalorder %s18, 0
      %p39 = por %p37, %p38
      %p40 = scmp.ne.s32.totalorder %s26, %s27
      %p41 = scmp.eq.s32.totalorder %s19, 1
      %p42 = por %p40, %p41
      %p44 = scmp.ne.s32.totalorder %s27, %s43
      %p45 = scmp.eq.s32.totalorder %s19, 0
      %p46 = por %p44, %p45
      %s48 = sadd.s32 %s47, 1
      %p51 = scmp.eq.s32.totalorder %s13, 1
      %p52 = scmp.ne.s32.totalorder %s47, %s49
      %p53 = scmp.eq.s32.totalorder %s13, 0
      %p54 = por %p52, %p53
      %p55 = scmp.ne.s32.totalorder %s47, %s49
      %p56 = scmp.eq.s32.totalorder %s18, 1
      %p57 = por %p55, %p56
      %p58 = scmp.ne.s32.totalorder %s49, %s50
      %p59 = scmp.eq.s32.totalorder %s18, 0
      %p60 = por %p58, %p59
      %p61 = scmp.ne.s32.totalorder %s49, %s50
      %p62 = scmp.eq.s32.totalorder %s19, 1
      %p63 = por %p61, %p62
      %p65 = scmp.ne.s32.totalorder %s50, %s64
      %p66 = scmp.eq.s32.totalorder %s19, 0
      %p67 = por %p65, %p66
      %s69 = sadd.s32 %s68, 1
      %p72 = scmp.eq.s32.totalorder %s13, 1
      %p73 = scmp.ne.s32.totalorder %s68, %s70
      %p74 = scmp.eq.s32.totalorder %s13, 0
      %p75 = por %p73, %p74
      %p76 = scmp.ne.s32.totalorder %s68, %s70
      %p77 = scmp.eq.s32.totalorder %s18, 1
      %p78 = por %p76, %p77
      %p79 = scmp.ne.s32.totalorder %s70, %s71
      %p80 = scmp.eq.s32.totalorder %s18, 0
      %p81 = por %p79, %p80
      %p82 = scmp.ne.s32.totalorder %s70, %s71
      %p83 = scmp.eq.s32.totalorder %s19, 1
      %p84 = por %p82, %p83
      %p86 = scmp.ne.s32.totalorder %s71, %s85
      %p87 = scmp.eq.s32.totalorder %s19, 0
      %p88 = por %p86, %p87
      %s89 = ssub.s32 %s13, %s20
      %p90 = scmp.eq.s32.totalorder %s89, 0
      %s92 = sadd.s32 %s91, 1
      %s93 = scalar_select %p90, %s91, %s92
      %p96 = pneg %p90
      %p97 = scmp.eq.s32.totalorder %s13, 1
      %p98 = por %p96, %p97
      %p99 = scmp.ne.s32.totalorder %s91, %s94
      %p100 = scmp.eq.s32.totalorder %s13, 0
      %p101 = por %p99, %p100
      %p102 = scmp.ne.s32.totalorder %s91, %s94
      %p103 = scmp.eq.s32.totalorder %s18, 1
      %p104 = por %p102, %p103
      %p105 = scmp.ne.s32.totalorder %s94, %s95
      %p106 = scmp.eq.s32.totalorder %s18, 0
      %p107 = por %p105, %p106
      %p108 = scmp.ne.s32.totalorder %s94, %s95
      %p109 = scmp.eq.s32.totalorder %s19, 1
      %p110 = por %p108, %p109
      %p112 = scmp.ne.s32.totalorder %s95, %s111
      %p113 = scmp.eq.s32.totalorder %s19, 0
      %p114 = por %p112, %p113
      %p115 = scmp.le.s32.totalorder 1, %s13
      %p116 = scmp.lt.s32.totalorder %s13, 3
      %p117 = pnand %p115, %p116
      %p118 = pneg %p117
      // Predicated region
      $region9: #{tpu_custom_call.1} parent=5 // pred_check
        _
      $region10: #{tpu_custom_call.1} parent=5 // pred_check_branch
        %120 = sbr.rel (%p117) target = $region12
      $region11: #{tpu_custom_call.1} parent=5 // pred_region
        %s121 = ssub.s32 %s13, 1
        // Predicated region
        $region13: #{tpu_custom_call.1} parent=11 // pred_check
          %p122 = pneg %p60
        $region14: #{tpu_custom_call.1} parent=11 // pred_check_branch
          %124 = sbr.rel (%p122) target = $region16
        $region15: #{tpu_custom_call.1} parent=11 // pred_region
          %s126 = ssub.s32 256, 256
          %127 = vsyncadd [#allocation3], %s126
          %s128 = sshll.u32 [#allocation2], 4
          %s129 = int_to_ptr.vmem [resolvable:$true] %s128
          %134 = dma.hbm_to_vmem [thread:$0]  %s1, 256, %s129, [#allocation3], 64, 64, 4
        $region16: #{tpu_custom_call.1} parent=11 // pred_fallthru
          _
        // Predicated region
        $region17: #{tpu_custom_call.1} parent=11 // pred_check
          %p135 = pneg %p81
        $region18: #{tpu_custom_call.1} parent=11 // pred_check_branch
          %137 = sbr.rel (%p135) target = $region20
        $region19: #{tpu_custom_call.1} parent=11 // pred_region
          _
        $region20: #{tpu_custom_call.1} parent=11 // pred_fallthru
          _
      $region12: #{tpu_custom_call.1} parent=5 // pred_fallthru
        _
      %p138 = scmp.lt.s32.totalorder %s13, 2
      // Predicated region
      $region21: #{tpu_custom_call.1} parent=5 // pred_check
        %p139 = pneg %p138
      $region22: #{tpu_custom_call.1} parent=5 // pred_check_branch
        %141 = sbr.rel (%p139) target = $region24
      $region23: #{tpu_custom_call.1} parent=5 // pred_region
        // Predicated region
        $region25: #{tpu_custom_call.1} parent=23 // pred_check
          %p142 = pneg %p33
        $region26: #{tpu_custom_call.1} parent=23 // pred_check_branch
          %144 = sbr.rel (%p142) target = $region28
        $region27: #{tpu_custom_call.1} parent=23 // pred_region
          %p145 = scmp.lt.s32.totalorder %s13, 1
          %s146 = scalar_select %p145, %s13, 1
          %s147 = smul.addr %s146, 2
          %s148 = scalar_lea.vmem %s0, %s147
        $region28: #{tpu_custom_call.1} parent=23 // pred_fallthru
          _
      $region24: #{tpu_custom_call.1} parent=5 // pred_fallthru
        _
      %p149 = scmp.le.s32.totalorder 1, %s13
      %p150 = scmp.lt.s32.totalorder %s13, 3
      %p151 = pnand %p149, %p150
      %p152 = pneg %p151
      // Predicated region
      $region29: #{tpu_custom_call.1} parent=5 // pred_check
        _
      $region30: #{tpu_custom_call.1} parent=5 // pred_check_branch
        %154 = sbr.rel (%p151) target = $region32
      $region31: #{tpu_custom_call.1} parent=5 // pred_region
        %s155 = ssub.s32 %s13, 1
        // Predicated region
        $region33: #{tpu_custom_call.1} parent=31 // pred_check
          %p156 = pneg %p60
        $region34: #{tpu_custom_call.1} parent=31 // pred_check_branch
          %158 = sbr.rel (%p156) target = $region36
        $region35: #{tpu_custom_call.1} parent=31 // pred_region
          %159 = dma.done [#allocation3], 256
        $region36: #{tpu_custom_call.1} parent=31 // pred_fallthru
          _
        %p160 = scmp.lt.s32.totalorder %s18, 1
        %s161 = scalar_select %p160, %s18, 1
        %s162 = smul.addr %s161, 2
        %s163 = scalar_lea.vmem %s0, %s162
        %p164 = pneg %p39
        %p165 = pneg %p36
        %p166 = pneg %p60
        %p167 = pneg %p57
        %p168 = pneg %p81
        %p169 = pneg %p78
        %p170 = pneg %p107
        %p171 = pneg %p104
        %s172 = sand.u32 %s94, 1
        %s173 = scalar_lea.sflag [#allocation4], %s172
        %s174 = sand.u32 %s94, 1
        %s175 = smul.addr %s174, 8
        %s176 = scalar_lea.vmem [#allocation5], %s175
        %p177 = scmp.lt.s32.totalorder %s18, 1
        %s178 = scalar_select %p177, %s18, 1
        %s179 = smul.addr %s178, 2
        %s180 = scalar_lea.vmem %s0, %s179
        %v182 = vld [vmem:[%s180] sm:$0x3]
        %v185 = vunpack.c.l.s4 1983009808
        %v186 = vunpack.c.0.s8 %v185
        %v187 = vlaneseq
        %v188 = vshrl.u32 %v187, 7
        %v189 = vsub.s32 %v186, %v188
        %v190 = vrot.slane %v182, %v189
        %191 = vrot.lane.b32.xlu0 %v190, 127
        %v192 = vpop.permute.xlu0 %191
        %194 = vrot.lane.b32.xlu0 %v190, 126
        %v195 = vpop.permute.xlu0 %194
        %197 = vrot.lane.b32.xlu0 %v190, 120
        %v198 = vpop.permute.xlu0 %197
        %200 = vrot.lane.b32.xlu0 %v190, 119
        %v201 = vpop.permute.xlu0 %200
        %203 = vrot.lane.b32.xlu0 %v190, 118
        %v204 = vpop.permute.xlu0 %203
        %206 = vrot.lane.b32.xlu0 %v190, 112
        %v207 = vpop.permute.xlu0 %206
        %209 = vrot.lane.b32.xlu0 %v190, 111
        %v210 = vpop.permute.xlu0 %209
        %212 = vrot.lane.b32.xlu0 %v190, 110
        %v213 = vpop.permute.xlu0 %212
        %v216 = vrot.slane %v192, 6
        %v218 = vrot.slane %v195, 4
        %v220 = vrot.slane %v198, 2
        %v222 = vrot.slane %v204, 6
        %v224 = vrot.slane %v207, 4
        %v226 = vrot.slane %v210, 2
        %vm227 = vcmask 1041408
        %v230 = vsel %vm227, %v182, %v216
        %vm231 = vcmask 1043456
        %v233 = vsel %vm231, %v230, %v218
        %vm234 = vcmask 1045504
        %v236 = vsel %vm234, %v233, %v220
        %v239 = vsel %vm227, %v201, %v222
        %v241 = vsel %vm231, %v239, %v224
        %v243 = vsel %vm234, %v241, %v226
        %v245 = vld [vmem:[#allocation2] sm:$0xf]
        %v246 = vld [vmem:[#allocation2 + $0x4] sm:$0xf]
        %v247 = vld [vmem:[#allocation2 + $0x8] sm:$0xf]
        %v248 = vld [vmem:[#allocation2 + $0xc] sm:$0xf]
        %v253 = vunpack.c.l.b16 %v245
        %v254 = vunpack.c.l.b16 %v246
        %v255 = vunpack.c.l.b16 %v247
        %v256 = vunpack.c.l.b16 %v248
        %v257 = vpack.c.b16 %v254, %v253
        %v258 = vpack.c.b16 %v256, %v255
        %vm259 = vcmask 293888
        %v261 = vsel %vm259, %v257, 0
        %v264 = vsel %vm259, %v258, 0
        %v266 = vsel %vm227, %v213, 0
        %268 = vmatprep.subr.bf16.mxu0 0
        %269 = vmatpush1.bf16.msra.mxu0 %v236
        %270 = vmatprep.subr.bf16.mxu0 0
        %271 = vmatpush1.bf16.msra.mxu0 %v243
        %272 = vmatprep.subr.bf16.mxu0 0
        %273 = vmatpush1.bf16.msra.mxu0 %v266
        %274 = vmatprep.subr.bf16.mxu0 0
        %275 = vmatpush1.bf16.msra.mxu0 0
        %276 = vmatprep.subr.bf16.mxu0 0
        %277 = vmatpush1.bf16.msra.mxu0 0
        %278 = vmatprep.subr.bf16.mxu0 0
        %279 = vmatpush1.bf16.msra.mxu0 0
        %280 = vmatprep.subr.bf16.mxu0 0
        %281 = vmatpush1.bf16.msra.mxu0 0
        %282 = vmatprep.subr.bf16.mxu0 0
        %283 = vmatpush1.bf16.msra.mxu0 0
        %284 = vmatprep.subr.bf16.mxu0 0
        %285 = vmatpush1.bf16.msra.mxu0 0
        %286 = vmatprep.subr.bf16.mxu0 0
        %287 = vmatpush1.bf16.msra.mxu0 0
        %288 = vmatprep.subr.bf16.mxu0 0
        %289 = vmatpush1.bf16.msra.mxu0 0
        %290 = vmatprep.subr.bf16.mxu0 0
        %291 = vmatpush1.bf16.msra.mxu0 0
        %292 = vmatprep.subr.bf16.mxu0 0
        %293 = vmatpush1.bf16.msra.mxu0 0
        %294 = vmatprep.subr.bf16.mxu0 0
        %295 = vmatpush1.bf16.msra.mxu0 0
        %296 = vmatprep.subr.bf16.mxu0 0
        %297 = vmatpush1.bf16.msra.mxu0 0
        %298 = vmatprep.subr.bf16.mxu0 0
        %299 = vmatpush1.bf16.msra.mxu0 0
        %300 = vmatprep.mubr.bf16.mxu0 0
        %301 = vmatmul.mubr.bf16.gmra.mrb[0].mxu0 %v261
        %v302 = vpop.f32.mrb[0].mxu0
        %v303 = vadd.f32 0.0, %v302
        %v304 = vpop.f32.mrb[0].mxu0
        %v305 = vpop.f32.mrb[0].mxu0
        %v306 = vadd.f32 0.0, %v305
        %v307 = vpop.f32.mrb[0].mxu0
        %308 = vmatprep.mubr.bf16.mxu0 0
        %309 = vmatmul.mubr.bf16.gmra.mrb[0].mxu0 %v264
        %v310 = vpop.f32.mrb[0].mxu0
        %v311 = vadd.f32 0.0, %v310
        %v312 = vpop.f32.mrb[0].mxu0
        %v313 = vpop.f32.mrb[0].mxu0
        %v314 = vadd.f32 0.0, %v313
        %v315 = vpop.f32.mrb[0].mxu0
        %316 = vdwg.mxu0
        %v317 = vmax.f32 %v303, %v306
        %v318 = vmax.f32 %v311, %v314
        %v319 = vmax.f32 %v317, %v318
        %v320 = vld [vmem:[%s2] sm:$0xff]
        %322 = vset.pattern.permute.xlu0 0
        %323 = vperm.xlu0 %322, %v320
        %v324 = vpop.permute.xlu0 %323
        %v326 = vadd.f32 %v319, %v324
        %v327 = vmax.f32 %v326, 0.0
        %328 = vst [vmem:[%s176] sm:$0xff] %v327
        %s329 = sand.u32 %s94, 1
        %s330 = scalar_lea.sflag [#allocation4], %s329
        %s331 = sand.u32 %s94, 1
        %s332 = smul.addr %s331, 8
        %s333 = scalar_lea.vmem [#allocation5], %s332
        // Predicated region
        $region37: #{tpu_custom_call.1} parent=31 // pred_check
          %p334 = pneg %p104
        $region38: #{tpu_custom_call.1} parent=31 // pred_check_branch
          %336 = sbr.rel (%p334) target = $region40
        $region39: #{tpu_custom_call.1} parent=31 // pred_region
          %s338 = ssub.s32 128, 128
          %339 = vsyncadd %s330, %s338
          %s340 = smul.addr %s18, 128
          %s341 = scalar_lea.hbm %s3, %s340
          %s343 = sshll.u32 %s333, 4
          %s344 = int_to_ptr.vmem [resolvable:$true] %s343
          %346 = dma.vmem_to_hbm [thread:$0]  %s344, 128, %s341, %s330
        $region40: #{tpu_custom_call.1} parent=31 // pred_fallthru
          _
      $region32: #{tpu_custom_call.1} parent=5 // pred_fallthru
        _
      %p347 = scmp.le.s32.totalorder 2, %s13
      // Predicated region
      $region41: #{tpu_custom_call.1} parent=5 // pred_check
        %p348 = pneg %p347
      $region42: #{tpu_custom_call.1} parent=5 // pred_check_branch
        %350 = sbr.rel (%p348) target = $region44
      $region43: #{tpu_custom_call.1} parent=5 // pred_region
        %s351 = ssub.s32 %s13, 2
        // Predicated region
        $region45: #{tpu_custom_call.1} parent=43 // pred_check
          %p352 = pneg %p110
        $region46: #{tpu_custom_call.1} parent=43 // pred_check_branch
          %354 = sbr.rel (%p352) target = $region48
        $region47: #{tpu_custom_call.1} parent=43 // pred_region
          %s355 = sand.u32 %s95, 1
          %s356 = scalar_lea.sflag [#allocation4], %s355
          %s357 = sand.u32 %s95, 1
          %s358 = smul.addr %s357, 8
          %s359 = scalar_lea.vmem [#allocation5], %s358
          %360 = dma.done %s356, 128
        $region48: #{tpu_custom_call.1} parent=43 // pred_fallthru
          _
      $region44: #{tpu_custom_call.1} parent=5 // pred_fallthru
        _
    $region6: #{tpu_custom_call.1} parent=1 // loop_footer
      %s17 = sadd.s32 1, %s13
    $region7: #{tpu_custom_call.1} parent=1 // loop_footer_branch
      %12 = sbr.rel target = $region3
    $region8: #{tpu_custom_call.1} parent=1 // loop_exit
      _
    %361 = vsyncpa [#allocation3], 1
    %s362 = scalar_lea.sflag [#allocation3], 1
    %363 = vsyncpa %s362, 1
    %364 = vsyncpa [#allocation4], 1
    %s365 = scalar_lea.sflag [#allocation4], 1
    %366 = vsyncpa %s365, 1

</llo_original>
